<compile_context>
chip_gen: v7x
topology: tpu7x:2x2x1
jax: 0.10.0
libtpu: 0.0.40
codegen_flags: <defaults>
</compile_context>

<pallas_src>
import jax
import jax.numpy as jnp
import numpy as np
from jax.experimental import pallas as pl
from jax.experimental.pallas import tpu as pltpu


# ----------------------------------------------------------------------------
# Fused TCN kernel factory
# ----------------------------------------------------------------------------
def make_fused_tcn_kernel(batch, ksize, layer_meta):
    """layer_meta: list of (Cin, Cout, dilation, L_in, L_out) per level (static)."""
    n_layers = len(layer_meta)

    def kernel(*refs):
        x_ref = refs[0]                              # (B*L0, C0)  f32
        wb_refs = refs[1:1 + 2 * n_layers]           # w0, b0, w1, b1, ...
        o_ref = refs[1 + 2 * n_layers]               # (B*L_final, C_last) f32
        op_scs = refs[2 + 2 * n_layers:]             # per-layer im2col scratch

        h = x_ref[...]                               # f32 activation, 2-D, batch-major rows
        for li, (cin, cout, dil, l_in, l_out) in enumerate(layer_meta):
            w_ref = wb_refs[2 * li]                  # (K*Cin, Cout) bf16
            b_ref = wb_refs[2 * li + 1]              # (1, Cout)     f32
            op_sc = op_scs[li]                       # (B*Lout, K*Cin) f32 scratch
            pad = (ksize - 1) * dil

            # Zero rows of the scratch implement the symmetric conv padding.
            op_sc[...] = jnp.zeros_like(op_sc)

            # Scatter each batch's activation once per tap (static slices only).
            for b in range(batch):
                blk = h[b * l_in:(b + 1) * l_in, :]              # (L_in, Cin)
                for k in range(ksize):
                    r0 = b * l_out + (pad - k * dil)
                    op_sc[r0:r0 + l_in, k * cin:(k + 1) * cin] = blk

            # Single MXU matmul per layer: (B*Lout, K*Cin) @ (K*Cin, Cout).
            acc = jnp.dot(op_sc[...].astype(jnp.bfloat16), w_ref[...],
                          preferred_element_type=jnp.float32)
            # Bias broadcast added once (hoisted), ReLU in f32.
            h = jnp.maximum(acc + b_ref[...], 0.0)               # (B*Lout, Cout) f32

        o_ref[...] = h.astype(o_ref.dtype)

    return kernel


# ----------------------------------------------------------------------------
# Host wrapper: PyTorch (B, C, L) layout in/out, one pallas_call for the stack
# ----------------------------------------------------------------------------
def temporal_conv_net(x_bcl, params, kernel_size):
    B, C_in, L = x_bcl.shape

    # Static per-layer geometry.
    layer_meta = []
    l_in, in_ch = L, C_in
    for (w2d, _bias, dil) in params["kernel"]:
        cout = w2d.shape[1]
        pad = (kernel_size - 1) * dil
        l_out = l_in + pad                           # nn.Conv1d with padding=(K-1)*d
        layer_meta.append((in_ch, cout, dil, l_in, l_out))
        l_in, in_ch = l_out, cout
    L_final, C_last = l_in, in_ch

    # Channels-last, batch folded into rows (single cheap host relayout).
    x2d = jnp.transpose(x_bcl, (0, 2, 1)).reshape(B * L, C_in).astype(jnp.float32)

    flat_wb = []
    for (w2d, bias, _dil) in params["kernel"]:
        flat_wb += [w2d, bias]

    scratch = [pltpu.VMEM((B * lo, kernel_size * ci), jnp.float32)
               for (ci, _co, _d, _li, lo) in layer_meta]

    out2d = pl.pallas_call(
        make_fused_tcn_kernel(B, kernel_size, layer_meta),
        out_shape=jax.ShapeDtypeStruct((B * L_final, C_last), jnp.float32),
        scratch_shapes=scratch,
    )(x2d, *flat_wb)

    # Back to PyTorch layout (B, C_last, L_final).
    return jnp.transpose(out2d.reshape(B, L_final, C_last), (0, 2, 1))


# ----------------------------------------------------------------------------
# Pure-JAX reference mirroring nn.Conv1d semantics exactly (same bf16 casts)
# ----------------------------------------------------------------------------
def ref_forward(x_bcl, params, kernel_size):
    h = x_bcl.astype(jnp.float32)
    for (w_oik, bias, dil) in params["ref"]:
        pad = (kernel_size - 1) * dil
        out = jax.lax.conv_general_dilated(
            h.astype(jnp.bfloat16), w_oik,
            window_strides=(1,),
            padding=[(pad, pad)],
            rhs_dilation=(dil,),
            dimension_numbers=("NCH", "OIH", "NCH"),
            preferred_element_type=jnp.float32)
        h = jnp.maximum(out + bias[None, :, None], 0.0)
    return h


# ----------------------------------------------------------------------------
# Deterministic parameter construction (nn.Conv1d weight layout, then folded)
# ----------------------------------------------------------------------------
def build_params(key, num_inputs, num_channels, kernel_size):
    params = {"kernel": [], "ref": []}
    in_ch = num_inputs
    for i, out_ch in enumerate(num_channels):
        key, kw, kb = jax.random.split(key, 3)
        dil = 2 ** i
        # nn.Conv1d weight: (Cout, Cin, K); bias: (Cout,)
        w_oik = 0.2 * jax.random.normal(kw, (out_ch, in_ch, kernel_size), jnp.float32)
        bias = 0.1 * jax.random.normal(kb, (out_ch,), jnp.float32)
        # Kernel layout: (Cout, Cin, K) -> (K, Cin, Cout) -> (K*Cin, Cout), bf16.
        w2d = jnp.transpose(w_oik, (2, 1, 0)).reshape(kernel_size * in_ch, out_ch)
        params["kernel"].append((w2d.astype(jnp.bfloat16), bias[None, :], dil))
        params["ref"].append((w_oik.astype(jnp.bfloat16), bias, dil))
        in_ch = out_ch
    return params


if __name__ == "__main__":
    # Small shapes consistent with the module's forward: x is (B, num_inputs, L).
    B = 2
    num_inputs = 4
    L = 16
    num_channels = [8, 16]
    kernel_size = 2

    key = jax.random.PRNGKey(0)
    key, kx = jax.random.split(key)
    x = jax.random.normal(kx, (B, num_inputs, L), jnp.float32)

    params = build_params(key, num_inputs, num_channels, kernel_size)

    out = temporal_conv_net(x, params, kernel_size)
    out = jax.block_until_ready(out)

    ref = jax.block_until_ready(ref_forward(x, params, kernel_size))

    total_pad = sum((kernel_size - 1) * (2 ** i) for i in range(len(num_channels)))
    assert out.shape == (B, num_channels[-1], L + total_pad), out.shape
    np.testing.assert_allclose(np.asarray(out), np.asarray(ref),
                               rtol=2e-3, atol=2e-3)
    print("KERNEL_OK")
</pallas_src>

<mosaic_0001>
module attributes {stable_mosaic.version = 11 : i64} {
  func.func @kernel(%arg0: memref<32x4xf32, #tpu.memory_space<vmem>>, %arg1: memref<8x8xbf16, #tpu.memory_space<vmem>>, %arg2: memref<1x8xf32, #tpu.memory_space<vmem>>, %arg3: memref<16x16xbf16, #tpu.memory_space<vmem>>, %arg4: memref<1x16xf32, #tpu.memory_space<vmem>>, %arg5: memref<38x16xf32, #tpu.memory_space<vmem>>, %arg6: memref<34x8xf32, #tpu.memory_space<vmem>>, %arg7: memref<38x16xf32, #tpu.memory_space<vmem>>) attributes {dimension_semantics = [], scalar_prefetch = 0 : i64, scratch_operands = 2 : i64, tpu.core_type = #tpu.core_type<tc>} {
    %c0 = arith.constant 0 : index
    %c0_0 = arith.constant 0 : index
    %0 = vector.load %arg0[%c0, %c0_0] : memref<32x4xf32, #tpu.memory_space<vmem>>, vector<32x4xf32>
    %cst = arith.constant 0.000000e+00 : f32
    %1 = vector.broadcast %cst : f32 to vector<34x8xf32>
    %c0_1 = arith.constant 0 : index
    %c0_2 = arith.constant 0 : index
    %2 = vector.load %arg6[%c0_1, %c0_2] : memref<34x8xf32, #tpu.memory_space<vmem>>, vector<34x8xf32>
    tpu.vector_store %arg6[%c0_1, %c0_2], %1 {strides = array<i32>} : memref<34x8xf32, #tpu.memory_space<vmem>>, vector<34x8xf32>,
    %3 = vector.extract_strided_slice %0 {offsets = [0, 0], sizes = [16, 4], strides = [1, 1]} : vector<32x4xf32> to vector<16x4xf32>
    %c1 = arith.constant 1 : index
    %c0_3 = arith.constant 0 : index
    %4 = vector.load %arg6[%c1, %c0_3] : memref<34x8xf32, #tpu.memory_space<vmem>>, vector<16x4xf32>
    tpu.vector_store %arg6[%c1, %c0_3], %3 {strides = array<i32>} : memref<34x8xf32, #tpu.memory_space<vmem>>, vector<16x4xf32>,
    %c0_4 = arith.constant 0 : index
    %c4 = arith.constant 4 : index
    %5 = vector.load %arg6[%c0_4, %c4] : memref<34x8xf32, #tpu.memory_space<vmem>>, vector<16x4xf32>
    tpu.vector_store %arg6[%c0_4, %c4], %3 {strides = array<i32>} : memref<34x8xf32, #tpu.memory_space<vmem>>, vector<16x4xf32>,
    %6 = vector.extract_strided_slice %0 {offsets = [16, 0], sizes = [16, 4], strides = [1, 1]} : vector<32x4xf32> to vector<16x4xf32>
    %c18 = arith.constant 18 : index
    %c0_5 = arith.constant 0 : index
    %7 = vector.load %arg6[%c18, %c0_5] : memref<34x8xf32, #tpu.memory_space<vmem>>, vector<16x4xf32>
    tpu.vector_store %arg6[%c18, %c0_5], %6 {strides = array<i32>} : memref<34x8xf32, #tpu.memory_space<vmem>>, vector<16x4xf32>,
    %c17 = arith.constant 17 : index
    %c4_6 = arith.constant 4 : index
    %8 = vector.load %arg6[%c17, %c4_6] : memref<34x8xf32, #tpu.memory_space<vmem>>, vector<16x4xf32>
    tpu.vector_store %arg6[%c17, %c4_6], %6 {strides = array<i32>} : memref<34x8xf32, #tpu.memory_space<vmem>>, vector<16x4xf32>,
    %c0_7 = arith.constant 0 : index
    %c0_8 = arith.constant 0 : index
    %9 = vector.load %arg6[%c0_7, %c0_8] : memref<34x8xf32, #tpu.memory_space<vmem>>, vector<34x8xf32>
    %10 = arith.truncf %9 : vector<34x8xf32> to vector<34x8xbf16>
    %c0_9 = arith.constant 0 : index
    %c0_10 = arith.constant 0 : index
    %11 = vector.load %arg1[%c0_9, %c0_10] : memref<8x8xbf16, #tpu.memory_space<vmem>>, vector<8x8xbf16>
    %cst_11 = arith.constant dense<0.000000e+00> : vector<34x8xf32>
    %12 = tpu.matmul %10, %11, %cst_11 {dimension_numbers = #tpu.dot_dimension_numbers<[1], [0], [0], [1], [0, 0, 1, 1], [], []>} : vector<34x8xbf16>, vector<8x8xbf16>, vector<34x8xf32> -> vector<34x8xf32>
    %c0_12 = arith.constant 0 : index
    %c0_13 = arith.constant 0 : index
    %13 = vector.load %arg2[%c0_12, %c0_13] : memref<1x8xf32, #tpu.memory_space<vmem>>, vector<1x8xf32>
    %14 = vector.broadcast %13 : vector<1x8xf32> to vector<34x8xf32>
    %15 = arith.addf %12, %14 : vector<34x8xf32>
    %cst_14 = arith.constant 0.000000e+00 : f32
    %16 = vector.broadcast %cst_14 : f32 to vector<34x8xf32>
    %17 = arith.maximumf %15, %16 : vector<34x8xf32>
    %cst_15 = arith.constant 0.000000e+00 : f32
    %18 = vector.broadcast %cst_15 : f32 to vector<38x16xf32>
    %c0_16 = arith.constant 0 : index
    %c0_17 = arith.constant 0 : index
    %19 = vector.load %arg7[%c0_16, %c0_17] : memref<38x16xf32, #tpu.memory_space<vmem>>, vector<38x16xf32>
    tpu.vector_store %arg7[%c0_16, %c0_17], %18 {strides = array<i32>} : memref<38x16xf32, #tpu.memory_space<vmem>>, vector<38x16xf32>,
    %20 = vector.extract_strided_slice %17 {offsets = [0, 0], sizes = [17, 8], strides = [1, 1]} : vector<34x8xf32> to vector<17x8xf32>
    %c2 = arith.constant 2 : index
    %c0_18 = arith.constant 0 : index
    %21 = vector.load %arg7[%c2, %c0_18] : memref<38x16xf32, #tpu.memory_space<vmem>>, vector<17x8xf32>
    tpu.vector_store %arg7[%c2, %c0_18], %20 {strides = array<i32>} : memref<38x16xf32, #tpu.memory_space<vmem>>, vector<17x8xf32>,
    %c0_19 = arith.constant 0 : index
    %c8 = arith.constant 8 : index
    %22 = vector.load %arg7[%c0_19, %c8] : memref<38x16xf32, #tpu.memory_space<vmem>>, vector<17x8xf32>
    tpu.vector_store %arg7[%c0_19, %c8], %20 {strides = array<i32>} : memref<38x16xf32, #tpu.memory_space<vmem>>, vector<17x8xf32>,
    %23 = vector.extract_strided_slice %17 {offsets = [17, 0], sizes = [17, 8], strides = [1, 1]} : vector<34x8xf32> to vector<17x8xf32>
    %c21 = arith.constant 21 : index
    %c0_20 = arith.constant 0 : index
    %24 = vector.load %arg7[%c21, %c0_20] : memref<38x16xf32, #tpu.memory_space<vmem>>, vector<17x8xf32>
    tpu.vector_store %arg7[%c21, %c0_20], %23 {strides = array<i32>} : memref<38x16xf32, #tpu.memory_space<vmem>>, vector<17x8xf32>,
    %c19 = arith.constant 19 : index
    %c8_21 = arith.constant 8 : index
    %25 = vector.load %arg7[%c19, %c8_21] : memref<38x16xf32, #tpu.memory_space<vmem>>, vector<17x8xf32>
    tpu.vector_store %arg7[%c19, %c8_21], %23 {strides = array<i32>} : memref<38x16xf32, #tpu.memory_space<vmem>>, vector<17x8xf32>,
    %c0_22 = arith.constant 0 : index
    %c0_23 = arith.constant 0 : index
    %26 = vector.load %arg7[%c0_22, %c0_23] : memref<38x16xf32, #tpu.memory_space<vmem>>, vector<38x16xf32>
    %27 = arith.truncf %26 : vector<38x16xf32> to vector<38x16xbf16>
    %c0_24 = arith.constant 0 : index
    %c0_25 = arith.constant 0 : index
    %28 = vector.load %arg3[%c0_24, %c0_25] : memref<16x16xbf16, #tpu.memory_space<vmem>>, vector<16x16xbf16>
    %cst_26 = arith.constant dense<0.000000e+00> : vector<38x16xf32>
    %29 = tpu.matmul %27, %28, %cst_26 {dimension_numbers = #tpu.dot_dimension_numbers<[1], [0], [0], [1], [0, 0, 1, 1], [], []>} : vector<38x16xbf16>, vector<16x16xbf16>, vector<38x16xf32> -> vector<38x16xf32>
    %c0_27 = arith.constant 0 : index
    %c0_28 = arith.constant 0 : index
    %30 = vector.load %arg4[%c0_27, %c0_28] : memref<1x16xf32, #tpu.memory_space<vmem>>, vector<1x16xf32>
    %31 = vector.broadcast %30 : vector<1x16xf32> to vector<38x16xf32>
    %32 = arith.addf %29, %31 : vector<38x16xf32>
    %cst_29 = arith.constant 0.000000e+00 : f32
    %33 = vector.broadcast %cst_29 : f32 to vector<38x16xf32>
    %34 = arith.maximumf %32, %33 : vector<38x16xf32>
    %c0_30 = arith.constant 0 : index
    %c0_31 = arith.constant 0 : index
    %35 = vector.load %arg5[%c0_30, %c0_31] : memref<38x16xf32, #tpu.memory_space<vmem>>, vector<38x16xf32>
    tpu.vector_store %arg5[%c0_30, %c0_31], %34 {strides = array<i32>} : memref<38x16xf32, #tpu.memory_space<vmem>>, vector<38x16xf32>,
    return
  }
}

</mosaic_0001>

<llo_original>
// kernel: tpu_custom_call.1
$region0: #{tpu_custom_call.1}
  #allocation0 [shape = 'u32[]', space=smem, size = 0x4, offset = 0x4, fixed_abs, tag = 'smem constant byte address 0x4 - core index']
  #allocation1 [shape = 'u32[144,128]{1,0:T(1,128)}', space=vmem, size = 0x12000, scoped, tag = 'internal scratch']
  #allocation2 [shape = 'f32[34,8]{1,0:T(8,128)}', space=vmem, size = 0x5000, scoped, tag = 'scratch operand']
  #allocation3 [shape = 'f32[38,16]{1,0:T(8,128)}', space=vmem, size = 0x5000, scoped, tag = 'scratch operand']
  %s0 = inlined_call_operand.vmem [shape: f32[32,4], index: 0, kind: input, shape index: {}]
  %s1 = inlined_call_operand.vmem [shape: bf16[8,8], index: 1, kind: input, shape index: {}]
  %s2 = inlined_call_operand.vmem [shape: f32[1,8], index: 2, kind: input, shape index: {}]
  %s3 = inlined_call_operand.vmem [shape: bf16[16,16], index: 3, kind: input, shape index: {}]
  %s4 = inlined_call_operand.vmem [shape: f32[1,16], index: 4, kind: input, shape index: {}]
  %s5 = inlined_call_operand.vmem [shape: f32[38,16], index: 5, kind: output, shape index: {}]
  %s6 = sld [smem:[#allocation0]]
  $region30: #{tpu_custom_call.1} parent=0
    _
  %s8 = ssub.s32 1, %s6
  %s9 = scalar_select 0, %s8, %s6
  // Predicated region
  $region2: #{tpu_custom_call.1} parent=0 // pred_check
    _
  $region3: #{tpu_custom_call.1} parent=0 // pred_check_branch
    %11 = sbr.rel (0) target = $region5
  $region4: #{tpu_custom_call.1} parent=0 // pred_region
    _
  $region5: #{tpu_custom_call.1} parent=0 // pred_fallthru
    _
  // Predicated region
  $region6: #{tpu_custom_call.1} parent=0 // pred_check
    _
  $region7: #{tpu_custom_call.1} parent=0 // pred_check_branch
    %13 = sbr.rel (0) target = $region9
  $region8: #{tpu_custom_call.1} parent=0 // pred_region
    _
  $region9: #{tpu_custom_call.1} parent=0 // pred_fallthru
    _
  // Predicated region
  $region10: #{tpu_custom_call.1} parent=0 // pred_check
    _
  $region11: #{tpu_custom_call.1} parent=0 // pred_check_branch
    %15 = sbr.rel (0) target = $region13
  $region12: #{tpu_custom_call.1} parent=0 // pred_region
    _
  $region13: #{tpu_custom_call.1} parent=0 // pred_fallthru
    _
  // Predicated region
  $region14: #{tpu_custom_call.1} parent=0 // pred_check
    _
  $region15: #{tpu_custom_call.1} parent=0 // pred_check_branch
    %17 = sbr.rel (0) target = $region17
  $region16: #{tpu_custom_call.1} parent=0 // pred_region
    _
  $region17: #{tpu_custom_call.1} parent=0 // pred_fallthru
    _
  // Predicated region
  $region18: #{tpu_custom_call.1} parent=0 // pred_check
    _
  $region19: #{tpu_custom_call.1} parent=0 // pred_check_branch
    %19 = sbr.rel (0) target = $region21
  $region20: #{tpu_custom_call.1} parent=0 // pred_region
    _
  $region21: #{tpu_custom_call.1} parent=0 // pred_fallthru
    _
  %v21 = vld [vmem:[%s0] sm:$0xff]
  %v22 = vld [vmem:[%s0 + $0x8] sm:$0xff]
  %v23 = vld [vmem:[%s0 + $0x10] sm:$0xff]
  %v24 = vld [vmem:[%s0 + $0x18] sm:$0xff]
  %vm25 = vcmask 64512
  %26 = vst.msk [vmem:[#allocation2] sm:$0xff] %vm25, 0.0
  %27 = vst.msk [vmem:[#allocation2 + $0x8] sm:$0xff] %vm25, 0.0
  %28 = vst.msk [vmem:[#allocation2 + $0x10] sm:$0xff] %vm25, 0.0
  %29 = vst.msk [vmem:[#allocation2 + $0x18] sm:$0xff] %vm25, 0.0
  %vm30 = vcmask 58368
  %31 = vst.msk [vmem:[#allocation2 + $0x20] sm:$0x3] %vm30, 0.0
  %vm32 = vcmask 31744
  %33 = vst.msk [vmem:[#allocation2 + $0x1] sm:$0xff] %vm32, %v21
  %34 = vst.msk [vmem:[#allocation2 + $0x9] sm:$0xff] %vm32, %v22
  %37 = vrot.lane.b32.xlu0 %v21, 4
  %v38 = vpop.permute.xlu0 %37
  %39 = vrot.lane.b32.xlu0 %v22, 4
  %v40 = vpop.permute.xlu0 %39
  %vm43 = vcmask 64544
  %44 = vst.msk [vmem:[#allocation2] sm:$0xff] %vm43, %v38
  %45 = vst.msk [vmem:[#allocation2 + $0x8] sm:$0xff] %vm43, %v40
  %46 = vst.msk [vmem:[#allocation2 + $0x12] sm:$0xff] %vm32, %v23
  %47 = vst.msk [vmem:[#allocation2 + $0x1a] sm:$0xff] %vm32, %v24
  %50 = vrot.lane.b32.xlu0 %v23, 4
  %v51 = vpop.permute.xlu0 %50
  %52 = vrot.lane.b32.xlu0 %v24, 4
  %v53 = vpop.permute.xlu0 %52
  %56 = vst.msk [vmem:[#allocation2 + $0x11] sm:$0xff] %vm43, %v51
  %57 = vst.msk [vmem:[#allocation2 + $0x19] sm:$0xff] %vm43, %v53
  %v58 = vld [vmem:[#allocation2] sm:$0xff]
  %v59 = vld [vmem:[#allocation2 + $0x8] sm:$0xff]
  %v60 = vld [vmem:[#allocation2 + $0x10] sm:$0xff]
  %v61 = vld [vmem:[#allocation2 + $0x18] sm:$0xff]
  %v62 = vld [vmem:[#allocation2 + $0x20] sm:$0x3]
  %v63 = vpack.c.bf16 %v59, %v58
  %v64 = vpack.c.bf16 %v61, %v60
  %v65 = vpack.c.bf16 %v62, %v62
  %v66 = vld [vmem:[%s1] sm:$0xf]
  %v67 = vld [vmem:[%s2] sm:$0x1]
  %v69 = vlaneseq
  %v70 = vshrl.u32 %v69, 7
  %v71 = vsub.s32 0, %v70
  %v72 = vrot.slane %v67, %v71
  %v75 = vsel %vm25, %v63, 0
  %v78 = vsel %vm25, %v64, 0
  %v81 = vsel %vm25, %v65, 0
  %vm83 = vcmask 1043456
  %v85 = vsel %vm83, %v66, 0
  %87 = vmatprep.subr.bf16.mxu0 0
  %88 = vmatpush1.bf16.msra.mxu0 %v85
  %89 = vmatprep.subr.bf16.mxu0 0
  %90 = vmatpush1.bf16.msra.mxu0 0
  %91 = vmatprep.subr.bf16.mxu0 0
  %92 = vmatpush1.bf16.msra.mxu0 0
  %93 = vmatprep.subr.bf16.mxu0 0
  %94 = vmatpush1.bf16.msra.mxu0 0
  %95 = vmatprep.subr.bf16.mxu0 0
  %96 = vmatpush1.bf16.msra.mxu0 0
  %97 = vmatprep.subr.bf16.mxu0 0
  %98 = vmatpush1.bf16.msra.mxu0 0
  %99 = vmatprep.subr.bf16.mxu0 0
  %100 = vmatpush1.bf16.msra.mxu0 0
  %101 = vmatprep.subr.bf16.mxu0 0
  %102 = vmatpush1.bf16.msra.mxu0 0
  %103 = vmatprep.subr.bf16.mxu0 0
  %104 = vmatpush1.bf16.msra.mxu0 0
  %105 = vmatprep.subr.bf16.mxu0 0
  %106 = vmatpush1.bf16.msra.mxu0 0
  %107 = vmatprep.subr.bf16.mxu0 0
  %108 = vmatpush1.bf16.msra.mxu0 0
  %109 = vmatprep.subr.bf16.mxu0 0
  %110 = vmatpush1.bf16.msra.mxu0 0
  %111 = vmatprep.subr.bf16.mxu0 0
  %112 = vmatpush1.bf16.msra.mxu0 0
  %113 = vmatprep.subr.bf16.mxu0 0
  %114 = vmatpush1.bf16.msra.mxu0 0
  %115 = vmatprep.subr.bf16.mxu0 0
  %116 = vmatpush1.bf16.msra.mxu0 0
  %117 = vmatprep.subr.bf16.mxu0 0
  %118 = vmatpush1.bf16.msra.mxu0 0
  %119 = vmatprep.mubr.bf16.mxu0 0
  %120 = vmatmul.mubr.bf16.gmra.mrb[0].mxu0 %v75
  %v121 = vpop.f32.mrb[0].mxu0
  %v122 = vadd.f32 %v72, %v121
  %v123 = vpop.f32.mrb[0].mxu0
  %v124 = vpop.f32.mrb[0].mxu0
  %v125 = vadd.f32 %v72, %v124
  %v126 = vpop.f32.mrb[0].mxu0
  %127 = vmatprep.mubr.bf16.mxu0 0
  %128 = vmatmul.mubr.bf16.gmra.mrb[0].mxu0 %v78
  %v129 = vpop.f32.mrb[0].mxu0
  %v130 = vadd.f32 %v72, %v129
  %v131 = vpop.f32.mrb[0].mxu0
  %v132 = vpop.f32.mrb[0].mxu0
  %v133 = vadd.f32 %v72, %v132
  %v134 = vpop.f32.mrb[0].mxu0
  %135 = vmatprep.mubr.bf16.mxu0 0
  %136 = vmatmul.mubr.bf16.gmra.mrb[0].mxu0 %v81
  %v137 = vpop.f32.mrb[0].mxu0
  %v138 = vadd.f32 %v72, %v137
  %v139 = vpop.f32.mrb[0].mxu0
  %v140 = vpop.f32.mrb[0].mxu0
  %v141 = vpop.f32.mrb[0].mxu0
  %142 = vdwg.mxu0
  %v143 = vmax.f32 %v122, 0.0
  %v144 = vmax.f32 %v125, 0.0
  %v145 = vmax.f32 %v130, 0.0
  %v146 = vmax.f32 %v133, 0.0
  %v147 = vmax.f32 %v138, 0.0
  %vm148 = vcmask 130048
  %149 = vst.msk [vmem:[#allocation3] sm:$0xff] %vm148, 0.0
  %150 = vst.msk [vmem:[#allocation3 + $0x8] sm:$0xff] %vm148, 0.0
  %151 = vst.msk [vmem:[#allocation3 + $0x10] sm:$0xff] %vm148, 0.0
  %152 = vst.msk [vmem:[#allocation3 + $0x18] sm:$0xff] %vm148, 0.0
  %vm153 = vcmask 128000
  %154 = vst.msk [vmem:[#allocation3 + $0x20] sm:$0x3f] %vm153, 0.0
  %155 = vst.msk [vmem:[#allocation3 + $0x2] sm:$0xff] %vm25, %v143
  %156 = vst.msk [vmem:[#allocation3 + $0xa] sm:$0xff] %vm25, %v144
  %vm157 = vcmask 57344
  %158 = vst.msk [vmem:[#allocation3 + $0x12] sm:$0x1] %vm157, %v145
  %162 = vrot.lane.b32.xlu0 %v143, 8
  %v163 = vpop.permute.xlu0 %162
  %164 = vrot.lane.b32.xlu0 %v144, 8
  %v165 = vpop.permute.xlu0 %164
  %166 = vrot.lane.b32.xlu0 %v145, 8
  %v167 = vpop.permute.xlu0 %166
  %vm171 = vcmask 130112
  %172 = vst.msk [vmem:[#allocation3] sm:$0xff] %vm171, %v163
  %173 = vst.msk [vmem:[#allocation3 + $0x8] sm:$0xff] %vm171, %v165
  %vm174 = vcmask 122944
  %175 = vst.msk [vmem:[#allocation3 + $0x10] sm:$0x1] %vm174, %v167
  %vm176 = vcmask 64513
  %177 = vst.msk [vmem:[#allocation3 + $0x14] sm:$0xfe] %vm176, %v145
  %178 = vst.msk [vmem:[#allocation3 + $0x1c] sm:$0xff] %vm25, %v146
  %179 = vst.msk [vmem:[#allocation3 + $0x24] sm:$0x3] %vm30, %v147
  %182 = vrot.lane.b32.xlu0 %v146, 8
  %v183 = vpop.permute.xlu0 %182
  %184 = vrot.lane.b32.xlu0 %v147, 8
  %v185 = vpop.permute.xlu0 %184
  %vm188 = vcmask 130113
  %189 = vst.msk [vmem:[#allocation3 + $0x12] sm:$0xfe] %vm188, %v167
  %190 = vst.msk [vmem:[#allocation3 + $0x1a] sm:$0xff] %vm171, %v183
  %vm191 = vcmask 123968
  %192 = vst.msk [vmem:[#allocation3 + $0x22] sm:$0x3] %vm191, %v185
  %v193 = vld [vmem:[#allocation3] sm:$0xff]
  %v194 = vld [vmem:[#allocation3 + $0x8] sm:$0xff]
  %v195 = vld [vmem:[#allocation3 + $0x10] sm:$0xff]
  %v196 = vld [vmem:[#allocation3 + $0x18] sm:$0xff]
  %v197 = vld [vmem:[#allocation3 + $0x20] sm:$0x3f]
  %v198 = vpack.c.bf16 %v194, %v193
  %v199 = vpack.c.bf16 %v196, %v195
  %v200 = vpack.c.bf16 %v197, %v197
  %v201 = vld [vmem:[%s3] sm:$0xf]
  %v202 = vld [vmem:[%s3 + $0x4] sm:$0xf]
  %v203 = vld [vmem:[%s4] sm:$0x1]
  %v205 = vlaneseq
  %v206 = vshrl.u32 %v205, 7
  %v207 = vsub.s32 0, %v206
  %v208 = vrot.slane %v203, %v207
  %v212 = vunpack.c.l.b16 %v201
  %v213 = vunpack.c.l.b16 %v202
  %v214 = vpack.c.b16 %v213, %v212
  %v217 = vsel %vm148, %v198, 0
  %v220 = vsel %vm148, %v199, 0
  %v223 = vsel %vm148, %v200, 0
  %225 = vmatprep.subr.bf16.mxu0 0
  %226 = vmatpush1.bf16.msra.mxu0 %v214
  %227 = vmatprep.subr.bf16.mxu0 0
  %228 = vmatpush1.bf16.msra.mxu0 0
  %229 = vmatprep.subr.bf16.mxu0 0
  %230 = vmatpush1.bf16.msra.mxu0 0
  %231 = vmatprep.subr.bf16.mxu0 0
  %232 = vmatpush1.bf16.msra.mxu0 0
  %233 = vmatprep.subr.bf16.mxu0 0
  %234 = vmatpush1.bf16.msra.mxu0 0
  %235 = vmatprep.subr.bf16.mxu0 0
  %236 = vmatpush1.bf16.msra.mxu0 0
  %237 = vmatprep.subr.bf16.mxu0 0
  %238 = vmatpush1.bf16.msra.mxu0 0
  %239 = vmatprep.subr.bf16.mxu0 0
  %240 = vmatpush1.bf16.msra.mxu0 0
  %241 = vmatprep.subr.bf16.mxu0 0
  %242 = vmatpush1.bf16.msra.mxu0 0
  %243 = vmatprep.subr.bf16.mxu0 0
  %244 = vmatpush1.bf16.msra.mxu0 0
  %245 = vmatprep.subr.bf16.mxu0 0
  %246 = vmatpush1.bf16.msra.mxu0 0
  %247 = vmatprep.subr.bf16.mxu0 0
  %248 = vmatpush1.bf16.msra.mxu0 0
  %249 = vmatprep.subr.bf16.mxu0 0
  %250 = vmatpush1.bf16.msra.mxu0 0
  %251 = vmatprep.subr.bf16.mxu0 0
  %252 = vmatpush1.bf16.msra.mxu0 0
  %253 = vmatprep.subr.bf16.mxu0 0
  %254 = vmatpush1.bf16.msra.mxu0 0
  %255 = vmatprep.subr.bf16.mxu0 0
  %256 = vmatpush1.bf16.msra.mxu0 0
  %257 = vmatprep.mubr.bf16.mxu0 0
  %258 = vmatmul.mubr.bf16.gmra.mrb[0].mxu0 %v217
  %v259 = vpop.f32.mrb[0].mxu0
  %v260 = vadd.f32 %v208, %v259
  %v261 = vpop.f32.mrb[0].mxu0
  %v262 = vpop.f32.mrb[0].mxu0
  %v263 = vadd.f32 %v208, %v262
  %v264 = vpop.f32.mrb[0].mxu0
  %265 = vmatprep.mubr.bf16.mxu0 0
  %266 = vmatmul.mubr.bf16.gmra.mrb[0].mxu0 %v220
  %v267 = vpop.f32.mrb[0].mxu0
  %v268 = vadd.f32 %v208, %v267
  %v269 = vpop.f32.mrb[0].mxu0
  %v270 = vpop.f32.mrb[0].mxu0
  %v271 = vadd.f32 %v208, %v270
  %v272 = vpop.f32.mrb[0].mxu0
  %273 = vmatprep.mubr.bf16.mxu0 0
  %274 = vmatmul.mubr.bf16.gmra.mrb[0].mxu0 %v223
  %v275 = vpop.f32.mrb[0].mxu0
  %v276 = vadd.f32 %v208, %v275
  %v277 = vpop.f32.mrb[0].mxu0
  %v278 = vpop.f32.mrb[0].mxu0
  %v279 = vpop.f32.mrb[0].mxu0
  %280 = vdwg.mxu0
  %v281 = vmax.f32 %v260, 0.0
  %v282 = vmax.f32 %v263, 0.0
  %v283 = vmax.f32 %v268, 0.0
  %v284 = vmax.f32 %v271, 0.0
  %v285 = vmax.f32 %v276, 0.0
  %286 = vst.msk [vmem:[%s5] sm:$0xff] %vm148, %v281
  %287 = vst.msk [vmem:[%s5 + $0x8] sm:$0xff] %vm148, %v282
  %288 = vst.msk [vmem:[%s5 + $0x10] sm:$0xff] %vm148, %v283
  %289 = vst.msk [vmem:[%s5 + $0x18] sm:$0xff] %vm148, %v284
  %290 = vst.msk [vmem:[%s5 + $0x20] sm:$0x3f] %vm153, %v285
  // Predicated region
  $region22: #{tpu_custom_call.1} parent=0 // pred_check
    _
  $region23: #{tpu_custom_call.1} parent=0 // pred_check_branch
    %292 = sbr.rel (0) target = $region25
  $region24: #{tpu_custom_call.1} parent=0 // pred_region
    _
  $region25: #{tpu_custom_call.1} parent=0 // pred_fallthru
    _
  // Predicated region
  $region26: #{tpu_custom_call.1} parent=0 // pred_check
    _
  $region27: #{tpu_custom_call.1} parent=0 // pred_check_branch
    %294 = sbr.rel (0) target = $region29
  $region28: #{tpu_custom_call.1} parent=0 // pred_region
    _
  $region29: #{tpu_custom_call.1} parent=0 // pred_fallthru
    _

</llo_original>
